<compile_context>
chip_gen: v7x
topology: tpu7x:2x2x1
jax: 0.10.0
libtpu: 0.0.40
codegen_flags: <defaults>
</compile_context>

<pallas_src>
import jax
import jax.numpy as jnp
from jax.experimental import pallas as pl
from jax.experimental.pallas import tpu as pltpu

# ---- ScaledIntent constants (deterministic, in-script) ----
RETURN_SCALE = 0.02
HORIZON_SCALE = 0.01
MAX_RETURN = 300.0

# ---- model dims (small, consistent with the forward) ----
BATCH = 2
STATE_DIM = 16
INTENT_DIM = 2
HIDDEN = 32
N_ACTION = 4

# ---- packed, lane-friendly kernel layout ----
K_IN = 32                            # narrow input: [state(16) | r | h | 1 | 0-pad]
RET_COL = STATE_DIM                  # 16: clipped desired_reward (raw; scale folded in W1)
HOR_COL = STATE_DIM + 1              # 17: clipped horizon       (raw; scale folded in W1)
ONES_COL = STATE_DIM + INTENT_DIM    # 18: constant-1 lane (folds bs / bi into W1)
H_PAD = 128                          # hidden padded to one full lane tile
A_PAD = 128                          # head weights kept 128-lane wide (clean MXU shapes)
W2_ROWS = H_PAD + 16                 # wo rows + bias row (+ bf16 sublane-tile pad)
MIN_TM = 16                          # bf16 sublane tile


def behavior_kernel(x_ref, w1_ref, w2_ref, out_ref):
    # Fused block-diagonal first layer: one bf16 MXU pass, f32 accumulation.
    #   pre[:, :128] = state @ Ws + bs            (ReLU state-embedding branch)
    #   pre[:, 128:] = [r,h]*scales @ Wi + bi     (sigmoid intent-gate branch)
    pre = jnp.dot(x_ref[...], w1_ref[...],
                  preferred_element_type=jnp.float32)          # (TM, 256) f32
    h_s = jnp.maximum(pre[:, :H_PAD], 0.0)
    gate = jax.nn.sigmoid(pre[:, H_PAD:])
    h = (h_s * gate).astype(w2_ref.dtype)                      # padded hidden cols stay 0

    # Output head: zero-padded wo (128x128) + bias row, both from one slab.
    logits = jnp.dot(h, w2_ref[0:H_PAD, :],
                     preferred_element_type=jnp.float32) + w2_ref[H_PAD:H_PAD + 1, :]
    out_ref[...] = logits[:, :N_ACTION].astype(out_ref.dtype)  # narrow (TM, 4) store
    # TODO(synk): the `if hasattr(self, 'logstd')` branch is never taken for the
    # discrete-action config used here, so no logstd concat is emitted.


def _round_up(x, m):
    return (x + m - 1) // m * m


def _choose_tm(b):
    """Largest power-of-two batch tile keeping padding waste <= 12.5%, and
    >= 2 grid blocks whenever the batch allows (so both v7x TensorCores get
    work under dimension_semantics=("parallel",))."""
    b_min = _round_up(max(b, 1), MIN_TM)
    for tm in (2048, 1024, 512, 256, 128, 64, 32, 16):
        padded = _round_up(b_min, tm)
        if (padded - b_min) * 8 > padded:          # > 12.5% padding waste
            continue
        if padded // tm < 2 and b_min > MIN_TM:    # keep the grid >= 2 blocks
            continue
        return tm
    return MIN_TM


def pack_params(params, dtype=jnp.bfloat16):
    """One-time host-side packing of the 6 small tensors into two resident
    slabs.  ScaledIntent scales (linear) and all biases are folded in, so the
    kernel is just 2 matmuls + ReLU*sigmoid."""
    w1 = jnp.zeros((K_IN, 2 * H_PAD), jnp.float32)
    w1 = w1.at[:STATE_DIM, :HIDDEN].set(params["ws"])
    w1 = w1.at[ONES_COL, :HIDDEN].set(params["bs"].reshape(-1))
    w1 = w1.at[RET_COL, H_PAD:H_PAD + HIDDEN].set(params["wi"][0] * RETURN_SCALE)
    w1 = w1.at[HOR_COL, H_PAD:H_PAD + HIDDEN].set(params["wi"][1] * HORIZON_SCALE)
    w1 = w1.at[ONES_COL, H_PAD:H_PAD + HIDDEN].set(params["bi"].reshape(-1))

    w2 = jnp.zeros((W2_ROWS, A_PAD), jnp.float32)
    w2 = w2.at[:HIDDEN, :N_ACTION].set(params["wo"])
    w2 = w2.at[H_PAD, :N_ACTION].set(params["bo"].reshape(-1))
    return w1.astype(dtype), w2.astype(dtype)


def behavior_fn_forward(state, desired_reward, horizon, packed_params):
    """Mirrors BehaviorFn.forward: concat intent -> ScaledIntent -> net."""
    w1, w2 = packed_params
    state = jnp.asarray(state, jnp.float32)
    desired_reward = jnp.asarray(desired_reward, jnp.float32).reshape(-1, 1)
    horizon = jnp.asarray(horizon, jnp.float32).reshape(-1, 1)

    B = state.shape[0]
    TM = _choose_tm(B)
    B_pad = _round_up(B, TM)

    # ScaledIntent clip on the narrow (B,1) arrays (scale factors live in w1).
    reward_c = jnp.minimum(desired_reward, MAX_RETURN)
    horizon_c = jnp.maximum(horizon, 1.0)

    # One fused concatenate builds the narrow lane-dense input slab, then a
    # single cast + row pad (no 128-wide slab, no per-column update slices).
    x = jnp.concatenate(
        [state, reward_c, horizon_c,
         jnp.ones((B, 1), jnp.float32),
         jnp.zeros((B, K_IN - ONES_COL - 1), jnp.float32)],
        axis=1).astype(w1.dtype)
    if B_pad != B:
        x = jnp.pad(x, ((0, B_pad - B), (0, 0)))

    out = pl.pallas_call(
        behavior_kernel,
        out_shape=jax.ShapeDtypeStruct((B_pad, N_ACTION), jnp.float32),
        grid_spec=pltpu.PrefetchScalarGridSpec(
            num_scalar_prefetch=0,
            grid=(B_pad // TM,),
            in_specs=[
                pl.BlockSpec((TM, K_IN), lambda i: (i, 0)),           # activations
                pl.BlockSpec((K_IN, 2 * H_PAD), lambda i: (0, 0)),    # W1 slab resident
                pl.BlockSpec((W2_ROWS, A_PAD), lambda i: (0, 0)),     # head slab resident
            ],
            out_specs=pl.BlockSpec((TM, N_ACTION), lambda i: (i, 0)),  # narrow logits
        ),
        compiler_params=pltpu.CompilerParams(
            dimension_semantics=("parallel",)),
    )(x, w1, w2)
    return out[:B]


def init_params(key):
    ks = jax.random.split(key, 3)
    return {
        "ws": jax.random.normal(ks[0], (STATE_DIM, HIDDEN), jnp.float32) * 0.1,
        "bs": jnp.zeros((1, HIDDEN), jnp.float32),
        "wi": jax.random.normal(ks[1], (INTENT_DIM, HIDDEN), jnp.float32) * 0.1,
        "bi": jnp.zeros((1, HIDDEN), jnp.float32),
        "wo": jax.random.normal(ks[2], (HIDDEN, N_ACTION), jnp.float32) * 0.1,
        "bo": jnp.zeros((1, N_ACTION), jnp.float32),
    }


if __name__ == "__main__":
    key = jax.random.PRNGKey(0)
    k_state, k_ret, k_hor, k_param = jax.random.split(key, 4)

    state = jax.random.normal(k_state, (BATCH, STATE_DIM), jnp.float32)
    desired_reward = jax.random.uniform(k_ret, (BATCH, 1), jnp.float32,
                                        minval=0.0, maxval=500.0)
    horizon = jax.random.uniform(k_hor, (BATCH, 1), jnp.float32,
                                 minval=0.0, maxval=200.0)
    params = init_params(k_param)
    packed = pack_params(params)            # one-time host-side packing (bf16 slabs)

    logits = behavior_fn_forward(state, desired_reward, horizon, packed)
    jax.block_until_ready(logits)

    # Pure-JAX f32 reference of the module semantics (BehaviorFn.forward).
    intent = jnp.concatenate([desired_reward, horizon], axis=1)
    t_intent = jnp.stack(
        [jnp.minimum(intent[:, 0], MAX_RETURN) * RETURN_SCALE,
         jnp.maximum(intent[:, 1], 1.0) * HORIZON_SCALE], axis=1)
    h_s = jnp.maximum(state @ params["ws"] + params["bs"], 0.0)
    gate = jax.nn.sigmoid(t_intent @ params["wi"] + params["bi"])
    ref = (h_s * gate) @ params["wo"] + params["bo"]

    assert logits.shape == (BATCH, N_ACTION)
    # bf16 activations/weights with f32 accumulation -> tolerance relaxed from 1e-5.
    assert jnp.allclose(logits, ref, atol=2e-2, rtol=2e-2)

    print("KERNEL_OK")
</pallas_src>

<mosaic_0001>
module attributes {stable_mosaic.version = 11 : i64} {
  func.func @behavior_kernel(%arg0: i32, %arg1: memref<16x32xbf16, #tpu.memory_space<vmem>>, %arg2: memref<32x256xbf16, #tpu.memory_space<vmem>>, %arg3: memref<144x128xbf16, #tpu.memory_space<vmem>>, %arg4: memref<16x4xf32, #tpu.memory_space<vmem>>) attributes {dimension_semantics = [#tpu.dimension_semantics<parallel>], iteration_bounds = array<i64: 1>, scalar_prefetch = 0 : i64, scratch_operands = 0 : i64, tpu.core_type = #tpu.core_type<tc>, window_params = [{transform_indices = @transform_0, window_bounds = array<i64: 16, 32>}, {pipeline_mode = #tpu.pipeline_mode<synchronous>, transform_indices = @transform_1, window_bounds = array<i64: 32, 256>}, {pipeline_mode = #tpu.pipeline_mode<synchronous>, transform_indices = @transform_2, window_bounds = array<i64: 144, 128>}, {transform_indices = @transform_3, window_bounds = array<i64: 16, 4>}]} {
    %c0 = arith.constant 0 : index
    %c0_0 = arith.constant 0 : index
    %0 = vector.load %arg1[%c0, %c0_0] : memref<16x32xbf16, #tpu.memory_space<vmem>>, vector<16x32xbf16>
    %c0_1 = arith.constant 0 : index
    %c0_2 = arith.constant 0 : index
    %1 = vector.load %arg2[%c0_1, %c0_2] : memref<32x256xbf16, #tpu.memory_space<vmem>>, vector<32x256xbf16>
    %cst = arith.constant dense<0.000000e+00> : vector<16x256xf32>
    %2 = tpu.matmul %0, %1, %cst {dimension_numbers = #tpu.dot_dimension_numbers<[1], [0], [0], [1], [0, 0, 1, 1], [], []>} : vector<16x32xbf16>, vector<32x256xbf16>, vector<16x256xf32> -> vector<16x256xf32>
    %3 = vector.extract_strided_slice %2 {offsets = [0, 0], sizes = [16, 128], strides = [1, 1]} : vector<16x256xf32> to vector<16x128xf32>
    %cst_3 = arith.constant 0.000000e+00 : f32
    %4 = vector.broadcast %cst_3 : f32 to vector<16x128xf32>
    %5 = arith.maximumf %3, %4 : vector<16x128xf32>
    %6 = vector.extract_strided_slice %2 {offsets = [0, 128], sizes = [16, 128], strides = [1, 1]} : vector<16x256xf32> to vector<16x128xf32>
    %7 = arith.negf %6 : vector<16x128xf32>
    %8 = math.exp %7 : vector<16x128xf32>
    %cst_4 = arith.constant 1.000000e+00 : f32
    %9 = vector.broadcast %cst_4 : f32 to vector<16x128xf32>
    %10 = arith.addf %9, %8 : vector<16x128xf32>
    %11 = arith.divf %9, %10 : vector<16x128xf32>
    %12 = arith.mulf %5, %11 : vector<16x128xf32>
    %13 = arith.truncf %12 : vector<16x128xf32> to vector<16x128xbf16>
    %c0_5 = arith.constant 0 : index
    %c0_6 = arith.constant 0 : index
    %14 = vector.load %arg3[%c0_5, %c0_6] : memref<144x128xbf16, #tpu.memory_space<vmem>>, vector<128x128xbf16>
    %cst_7 = arith.constant dense<0.000000e+00> : vector<16x128xf32>
    %15 = tpu.matmul %13, %14, %cst_7 {dimension_numbers = #tpu.dot_dimension_numbers<[1], [0], [0], [1], [0, 0, 1, 1], [], []>} : vector<16x128xbf16>, vector<128x128xbf16>, vector<16x128xf32> -> vector<16x128xf32>
    %c128 = arith.constant 128 : index
    %c0_8 = arith.constant 0 : index
    %16 = vector.load %arg3[%c128, %c0_8] : memref<144x128xbf16, #tpu.memory_space<vmem>>, vector<1x128xbf16>
    %17 = arith.extf %16 : vector<1x128xbf16> to vector<1x128xf32>
    %18 = vector.broadcast %17 : vector<1x128xf32> to vector<16x128xf32>
    %19 = arith.addf %15, %18 : vector<16x128xf32>
    %20 = vector.extract_strided_slice %19 {offsets = [0, 0], sizes = [16, 4], strides = [1, 1]} : vector<16x128xf32> to vector<16x4xf32>
    %c0_9 = arith.constant 0 : index
    %c0_10 = arith.constant 0 : index
    %21 = vector.load %arg4[%c0_9, %c0_10] : memref<16x4xf32, #tpu.memory_space<vmem>>, vector<16x4xf32>
    tpu.vector_store %arg4[%c0_9, %c0_10], %20 {strides = array<i32>} : memref<16x4xf32, #tpu.memory_space<vmem>>, vector<16x4xf32>,
    return
  }
  func.func @transform_0(%arg0: i32) -> (i32, i32) {
    %c0_i32 = arith.constant 0 : i32
    %c0_i32_0 = arith.constant 0 : i32
    return %arg0, %c0_i32 : i32, i32
  }
  func.func @transform_1(%arg0: i32) -> (i32, i32) {
    %c0_i32 = arith.constant 0 : i32
    %c0_i32_0 = arith.constant 0 : i32
    %c0_i32_1 = arith.constant 0 : i32
    return %c0_i32, %c0_i32_0 : i32, i32
  }
  func.func @transform_2(%arg0: i32) -> (i32, i32) {
    %c0_i32 = arith.constant 0 : i32
    %c0_i32_0 = arith.constant 0 : i32
    %c0_i32_1 = arith.constant 0 : i32
    return %c0_i32, %c0_i32_0 : i32, i32
  }
  func.func @transform_3(%arg0: i32) -> (i32, i32) {
    %c0_i32 = arith.constant 0 : i32
    %c0_i32_0 = arith.constant 0 : i32
    return %arg0, %c0_i32 : i32, i32
  }
}

</mosaic_0001>

<llo_original>
// kernel: tpu_custom_call.1
$region0: #{tpu_custom_call.1}
  #allocation0 [shape = 'u32[]', space=smem, size = 0x4, offset = 0x4, fixed_abs, tag = 'smem constant byte address 0x4 - core index']
  #allocation1 [shape = 'u32[144,128]{1,0:T(1,128)}', space=vmem, size = 0x12000, scoped, tag = 'internal scratch']
  %s0 = inlined_call_operand.hbm [shape: bf16[16,32], index: 0, kind: input, shape index: {}]
  %s1 = inlined_call_operand.hbm [shape: bf16[32,256], index: 1, kind: input, shape index: {}]
  %s2 = inlined_call_operand.hbm [shape: bf16[144,128], index: 2, kind: input, shape index: {}]
  %s3 = inlined_call_operand.vmem [shape: f32[16,4], index: 3, kind: output, shape index: {}]
  %s4 = sld [smem:[#allocation0]]
  $region34: #{tpu_custom_call.1} parent=0
    _
  %s6 = ssub.s32 1, %s4
  %s7 = scalar_select 0, %s6, %s4
  $region1: #{tpu_custom_call.1} parent=0
    #allocation2 [shape = 'u8[4096]{0}', space=vmem, size = 0x1000, scoped, tag = 'input window, operand 0, single buffered']
    #allocation3 [shape = 's32[1]{0}', space=sflag, size = 0x4, scoped, tag = 'scoped memory for tpu_custom_call.1']
    #allocation4 [shape = 'u8[16384]{0}', space=vmem, size = 0x4000, scoped, tag = 'input window, operand 1, single buffered']
    #allocation5 [shape = 's32[1]{0}', space=sflag, size = 0x4, scoped, tag = 'scoped memory for tpu_custom_call.1']
    #allocation6 [shape = 'u8[36864]{0}', space=vmem, size = 0x9000, scoped, tag = 'input window, operand 2, single buffered']
    %8 = vsyncpa [#allocation3], 0
    %9 = vsyncpa [#allocation5], 0
    // Predicated region
    $region2: #{tpu_custom_call.1} parent=1 // pred_check
      _
    $region3: #{tpu_custom_call.1} parent=1 // pred_check_branch
      %11 = sbr.rel (0) target = $region5
    $region4: #{tpu_custom_call.1} parent=1 // pred_region
      %s13 = ssub.s32 128, 128
      %14 = vsyncadd [#allocation3], %s13
      %s15 = sshll.u32 [#allocation2], 4
      %s16 = int_to_ptr.vmem [resolvable:$true] %s15
      %21 = dma.hbm_to_vmem [thread:$0]  %s0, 128, %s16, [#allocation3], 64, 64, 4
    $region5: #{tpu_custom_call.1} parent=1 // pred_fallthru
      _
    // Predicated region
    $region6: #{tpu_custom_call.1} parent=1 // pred_check
      _
    $region7: #{tpu_custom_call.1} parent=1 // pred_check_branch
      %23 = sbr.rel (0) target = $region9
    $region8: #{tpu_custom_call.1} parent=1 // pred_region
      %s25 = ssub.s32 512, 512
      %26 = vsyncadd [#allocation5], %s25
      %s27 = sshll.u32 [#allocation4], 4
      %s28 = int_to_ptr.vmem [resolvable:$true] %s27
      %33 = dma.hbm_to_vmem [thread:$0]  %s1, 512, %s28, [#allocation5], 128, 128, 8
    $region9: #{tpu_custom_call.1} parent=1 // pred_fallthru
      _
    // Predicated region
    $region10: #{tpu_custom_call.1} parent=1 // pred_check
      _
    $region11: #{tpu_custom_call.1} parent=1 // pred_check_branch
      %35 = sbr.rel (0) target = $region13
    $region12: #{tpu_custom_call.1} parent=1 // pred_region
      %s37 = ssub.s32 1152, 1152
      %38 = vsyncadd [#allocation5], %s37
      %s39 = sshll.u32 [#allocation6], 4
      %s40 = int_to_ptr.vmem [resolvable:$true] %s39
      %45 = dma.hbm_to_vmem [thread:$0]  %s2, 1152, %s40, [#allocation5], 64, 64, 4
    $region13: #{tpu_custom_call.1} parent=1 // pred_fallthru
      _
    // Predicated region
    $region14: #{tpu_custom_call.1} parent=1 // pred_check
      _
    $region15: #{tpu_custom_call.1} parent=1 // pred_check_branch
      %47 = sbr.rel (0) target = $region17
    $region16: #{tpu_custom_call.1} parent=1 // pred_region
      %48 = dma.done [#allocation3], 128
    $region17: #{tpu_custom_call.1} parent=1 // pred_fallthru
      _
    // Predicated region
    $region18: #{tpu_custom_call.1} parent=1 // pred_check
      _
    $region19: #{tpu_custom_call.1} parent=1 // pred_check_branch
      %50 = sbr.rel (0) target = $region21
    $region20: #{tpu_custom_call.1} parent=1 // pred_region
      %51 = dma.done [#allocation5], 512
    $region21: #{tpu_custom_call.1} parent=1 // pred_fallthru
      _
    // Predicated region
    $region22: #{tpu_custom_call.1} parent=1 // pred_check
      _
    $region23: #{tpu_custom_call.1} parent=1 // pred_check_branch
      %53 = sbr.rel (0) target = $region25
    $region24: #{tpu_custom_call.1} parent=1 // pred_region
      %54 = dma.done [#allocation5], 1152
    $region25: #{tpu_custom_call.1} parent=1 // pred_fallthru
      _
    %v56 = vld [vmem:[#allocation2] sm:$0xf]
    %v57 = vld [vmem:[#allocation2 + $0x4] sm:$0xf]
    %v58 = vld [vmem:[#allocation4] sm:$0xff]
    %v59 = vld [vmem:[#allocation4 + $0x8] sm:$0xff]
    %v60 = vld [vmem:[#allocation4 + $0x10] sm:$0xff]
    %v61 = vld [vmem:[#allocation4 + $0x18] sm:$0xff]
    %v64 = vunpack.c.l.b16 %v56
    %v65 = vunpack.c.l.b16 %v57
    %v66 = vpack.c.b16 %v65, %v64
    %v71 = vunpack.c.l.b16 %v58
    %v72 = vunpack.c.h.b16 %v58
    %v73 = vunpack.c.l.b16 %v59
    %v74 = vunpack.c.h.b16 %v59
    %v75 = vunpack.c.l.b16 %v60
    %v76 = vunpack.c.h.b16 %v60
    %v77 = vunpack.c.l.b16 %v61
    %v78 = vunpack.c.h.b16 %v61
    %v79 = vpack.c.b16 %v73, %v71
    %v80 = vpack.c.b16 %v74, %v72
    %v81 = vpack.c.b16 %v77, %v75
    %v82 = vpack.c.b16 %v78, %v76
    %vm87 = vcmask 261120
    %v89 = vsel %vm87, %v66, 0
    %91 = vmatprep.subr.bf16.mxu0 %v80
    %92 = vmatpush1.bf16.msra.mxu0 %v79
    %93 = vmatprep.subr.bf16.mxu0 %v82
    %94 = vmatpush1.bf16.msra.mxu0 %v81
    %95 = vmatprep.subr.bf16.mxu0 0
    %96 = vmatpush1.bf16.msra.mxu0 0
    %97 = vmatprep.subr.bf16.mxu0 0
    %98 = vmatpush1.bf16.msra.mxu0 0
    %99 = vmatprep.subr.bf16.mxu0 0
    %100 = vmatpush1.bf16.msra.mxu0 0
    %101 = vmatprep.subr.bf16.mxu0 0
    %102 = vmatpush1.bf16.msra.mxu0 0
    %103 = vmatprep.subr.bf16.mxu0 0
    %104 = vmatpush1.bf16.msra.mxu0 0
    %105 = vmatprep.subr.bf16.mxu0 0
    %106 = vmatpush1.bf16.msra.mxu0 0
    %107 = vmatprep.subr.bf16.mxu0 0
    %108 = vmatpush1.bf16.msra.mxu0 0
    %109 = vmatprep.subr.bf16.mxu0 0
    %110 = vmatpush1.bf16.msra.mxu0 0
    %111 = vmatprep.subr.bf16.mxu0 0
    %112 = vmatpush1.bf16.msra.mxu0 0
    %113 = vmatprep.subr.bf16.mxu0 0
    %114 = vmatpush1.bf16.msra.mxu0 0
    %115 = vmatprep.subr.bf16.mxu0 0
    %116 = vmatpush1.bf16.msra.mxu0 0
    %117 = vmatprep.subr.bf16.mxu0 0
    %118 = vmatpush1.bf16.msra.mxu0 0
    %119 = vmatprep.subr.bf16.mxu0 0
    %120 = vmatpush1.bf16.msra.mxu0 0
    %121 = vmatprep.subr.bf16.mxu0 0
    %122 = vmatpush1.bf16.msra.mxu0 0
    %123 = vmatprep.mubr.bf16.mxu0 0
    %124 = vmatmul.mubr.bf16.gmra.mrb[0].mxu0 %v89
    %v125 = vpop.f32.mrb[0].mxu0
    %v126 = vadd.f32 0.0, %v125
    %v127 = vpop.f32.mrb[0].mxu0
    %v128 = vadd.f32 0.0, %v127
    %v129 = vpop.f32.mrb[0].mxu0
    %v130 = vadd.f32 0.0, %v129
    %v131 = vpop.f32.mrb[0].mxu0
    %v132 = vadd.f32 0.0, %v131
    %133 = vdwg.mxu0
    %v134 = vmax.f32 %v126, 0.0
    %v135 = vmax.f32 %v130, 0.0
    %v136 = vxor.u32 %v128, 2147483648
    %v137 = vxor.u32 %v132, 2147483648
    %v138 = vmul.f32 %v136, 1.442695
    %v139 = vpow.pop %v138
    %v140 = vmul.f32 %v137, 1.442695
    %v141 = vpow.pop %v140
    %v142 = vadd.f32 %v139, 1.0
    %v143 = vadd.f32 %v141, 1.0
    %v144 = vrcp.pop %v142
    %v145 = vmul.f32 1.0, %v144
    %v146 = vrcp.pop %v143
    %v147 = vmul.f32 1.0, %v146
    %v148 = vmul.f32 %v134, %v145
    %v149 = vmul.f32 %v135, %v147
    %v150 = vpack.c.bf16 %v149, %v148
    %v151 = vld [vmem:[#allocation6] sm:$0xf]
    %v152 = vld [vmem:[#allocation6 + $0x4] sm:$0xf]
    %v153 = vld [vmem:[#allocation6 + $0x8] sm:$0xf]
    %v154 = vld [vmem:[#allocation6 + $0xc] sm:$0xf]
    %v155 = vld [vmem:[#allocation6 + $0x10] sm:$0xf]
    %v156 = vld [vmem:[#allocation6 + $0x14] sm:$0xf]
    %v157 = vld [vmem:[#allocation6 + $0x18] sm:$0xf]
    %v158 = vld [vmem:[#allocation6 + $0x1c] sm:$0xf]
    %v159 = vld [vmem:[#allocation6 + $0x20] sm:$0xf]
    %v160 = vld [vmem:[#allocation6 + $0x24] sm:$0xf]
    %v161 = vld [vmem:[#allocation6 + $0x28] sm:$0xf]
    %v162 = vld [vmem:[#allocation6 + $0x2c] sm:$0xf]
    %v163 = vld [vmem:[#allocation6 + $0x30] sm:$0xf]
    %v164 = vld [vmem:[#allocation6 + $0x34] sm:$0xf]
    %v165 = vld [vmem:[#allocation6 + $0x38] sm:$0xf]
    %v166 = vld [vmem:[#allocation6 + $0x3c] sm:$0xf]
    %v167 = vld [vmem:[#allocation6 + $0x40] sm:$0x1]
    %v168 = vunpack.c.l.bf16 %v167
    %v169 = vlaneseq
    %v170 = vshrl.u32 %v169, 7
    %v171 = vsub.s32 0, %v170
    %v172 = vrot.slane %v168, %v171
    %v189 = vunpack.c.l.b16 %v151
    %v190 = vunpack.c.l.b16 %v152
    %v191 = vunpack.c.l.b16 %v153
    %v192 = vunpack.c.l.b16 %v154
    %v193 = vunpack.c.l.b16 %v155
    %v194 = vunpack.c.l.b16 %v156
    %v195 = vunpack.c.l.b16 %v157
    %v196 = vunpack.c.l.b16 %v158
    %v197 = vunpack.c.l.b16 %v159
    %v198 = vunpack.c.l.b16 %v160
    %v199 = vunpack.c.l.b16 %v161
    %v200 = vunpack.c.l.b16 %v162
    %v201 = vunpack.c.l.b16 %v163
    %v202 = vunpack.c.l.b16 %v164
    %v203 = vunpack.c.l.b16 %v165
    %v204 = vunpack.c.l.b16 %v166
    %v205 = vpack.c.b16 %v190, %v189
    %v206 = vpack.c.b16 %v192, %v191
    %v207 = vpack.c.b16 %v194, %v193
    %v208 = vpack.c.b16 %v196, %v195
    %v209 = vpack.c.b16 %v198, %v197
    %v210 = vpack.c.b16 %v200, %v199
    %v211 = vpack.c.b16 %v202, %v201
    %v212 = vpack.c.b16 %v204, %v203
    %221 = vmatprep.subr.bf16.mxu0 0
    %222 = vmatpush1.bf16.msra.mxu0 %v205
    %223 = vmatprep.subr.bf16.mxu0 0
    %224 = vmatpush1.bf16.msra.mxu0 %v206
    %225 = vmatprep.subr.bf16.mxu0 0
    %226 = vmatpush1.bf16.msra.mxu0 %v207
    %227 = vmatprep.subr.bf16.mxu0 0
    %228 = vmatpush1.bf16.msra.mxu0 %v208
    %229 = vmatprep.subr.bf16.mxu0 0
    %230 = vmatpush1.bf16.msra.mxu0 %v209
    %231 = vmatprep.subr.bf16.mxu0 0
    %232 = vmatpush1.bf16.msra.mxu0 %v210
    %233 = vmatprep.subr.bf16.mxu0 0
    %234 = vmatpush1.bf16.msra.mxu0 %v211
    %235 = vmatprep.subr.bf16.mxu0 0
    %236 = vmatpush1.bf16.msra.mxu0 %v212
    %237 = vmatprep.subr.bf16.mxu0 0
    %238 = vmatpush1.bf16.msra.mxu0 0
    %239 = vmatprep.subr.bf16.mxu0 0
    %240 = vmatpush1.bf16.msra.mxu0 0
    %241 = vmatprep.subr.bf16.mxu0 0
    %242 = vmatpush1.bf16.msra.mxu0 0
    %243 = vmatprep.subr.bf16.mxu0 0
    %244 = vmatpush1.bf16.msra.mxu0 0
    %245 = vmatprep.subr.bf16.mxu0 0
    %246 = vmatpush1.bf16.msra.mxu0 0
    %247 = vmatprep.subr.bf16.mxu0 0
    %248 = vmatpush1.bf16.msra.mxu0 0
    %249 = vmatprep.subr.bf16.mxu0 0
    %250 = vmatpush1.bf16.msra.mxu0 0
    %251 = vmatprep.subr.bf16.mxu0 0
    %252 = vmatpush1.bf16.msra.mxu0 0
    %253 = vmatprep.mubr.bf16.mxu0 0
    %254 = vmatmul.mubr.bf16.gmra.mrb[0].mxu0 %v150
    %v255 = vpop.f32.mrb[0].mxu0
    %v256 = vadd.f32 %v172, %v255
    %v257 = vpop.f32.mrb[0].mxu0
    %v258 = vpop.f32.mrb[0].mxu0
    %v259 = vadd.f32 %v172, %v258
    %v260 = vpop.f32.mrb[0].mxu0
    %261 = vdwg.mxu0
    %vm262 = vcmask 31744
    %263 = vst.msk [vmem:[%s3] sm:$0xff] %vm262, %v256
    %264 = vst.msk [vmem:[%s3 + $0x8] sm:$0xff] %vm262, %v259
    // Predicated region
    $region26: #{tpu_custom_call.1} parent=1 // pred_check
      _
    $region27: #{tpu_custom_call.1} parent=1 // pred_check_branch
      %266 = sbr.rel (0) target = $region29
    $region28: #{tpu_custom_call.1} parent=1 // pred_region
      _
    $region29: #{tpu_custom_call.1} parent=1 // pred_fallthru
      _
    // Predicated region
    $region30: #{tpu_custom_call.1} parent=1 // pred_check
      _
    $region31: #{tpu_custom_call.1} parent=1 // pred_check_branch
      %268 = sbr.rel (0) target = $region33
    $region32: #{tpu_custom_call.1} parent=1 // pred_region
      _
    $region33: #{tpu_custom_call.1} parent=1 // pred_fallthru
      _
    %269 = vsyncpa [#allocation3], 1
    %270 = vsyncpa [#allocation5], 1

</llo_original>
